<compile_context>
chip_gen: v6e
topology: v6e:2x2x1
jax: 0.10.0
libtpu: 0.0.40
codegen_flags: <defaults>
</compile_context>

<pallas_src>
import jax
import jax.numpy as jnp
from jax import lax
from jax.experimental import pallas as pl
from jax.experimental.pallas import tpu as pltpu

# Problem sizes (small, consistent with the module's forward).
N = 2          # batch
C_IN = 4       # in_channel
DEPTH = 8      # depth
H = 16
W = 16
HW = H * W                              # 256 -> lane axis (per batch element)
PAD = 18                                # max dilation / padding
DILATIONS = (6, 12, 18)
N_CONV_TAPS = 1 + 9 * len(DILATIONS)    # 28 taps: 1x1 center + 3 dilated 3x3
K_CONV = N_CONV_TAPS * C_IN             # 112 conv rows
K_IMG = K_CONV + C_IN                   # 116 rows incl. pooled (image branch)
K_PAD = 128                             # contraction dim padded to 128
PREC = lax.Precision.HIGHEST            # offline fusion / reference only


# ----------------------------------------------------------------------------
# Kernel: single invocation, both batch elements along the lane axis.
# ----------------------------------------------------------------------------
def _aspp_kernel(taps_ref, w_ref, b_ref, out_ref):
    # taps_ref: (128, N*HW) bf16 -- 28 conv taps * 4 ch, 4 pooled rows, 12 zero
    #                               rows; batch elements stacked along lanes.
    # w_ref   : (8, 128)    bf16 -- final 1x1 projection pre-fused into every
    #                               branch (incl. image-level branch columns).
    # b_ref   : (8, 1)      f32  -- fused total bias.
    # out_ref : (8, N*HW)   f32  -- DEPTH on sublanes, N*H*W on lanes.
    out_ref[...] = (
        jnp.dot(w_ref[...], taps_ref[...], preferred_element_type=jnp.float32)
        + b_ref[...]
    )


def aspp_pallas(taps, wbig, b_total):
    """taps: (K_PAD, N*HW) bf16. Returns (DEPTH, N*HW) f32."""
    cols = taps.shape[1]
    return pl.pallas_call(
        _aspp_kernel,
        out_shape=jax.ShapeDtypeStruct((DEPTH, cols), jnp.float32),
        grid=(1,),
        in_specs=[
            pl.BlockSpec((K_PAD, cols), lambda i: (0, 0)),
            pl.BlockSpec((DEPTH, K_PAD), lambda i: (0, 0)),
            pl.BlockSpec((DEPTH, 1), lambda i: (0, 0)),
        ],
        out_specs=pl.BlockSpec((DEPTH, cols), lambda i: (0, 0)),
        compiler_params=pltpu.CompilerParams(
            dimension_semantics=("arbitrary",)),
    )(taps, wbig, b_total)


# ----------------------------------------------------------------------------
# Tap-stack construction (layout plumbing + global avg pool), fused under the
# same jax.jit as the pallas_call so it never round-trips HBM as f32.
# Row order: [1x1 center] [d=6: 9 taps] [d=12: 9 taps] [d=18: 9 taps] [pooled].
# ----------------------------------------------------------------------------
def build_taps(x_nchw):
    n = x_nchw.shape[0]
    xp = jnp.pad(x_nchw, ((0, 0), (0, 0), (PAD, PAD), (PAD, PAD)))
    rows = [x_nchw.reshape(n, C_IN, HW)]                     # 1x1 center taps
    for d in DILATIONS:
        for ky in range(3):
            for kx in range(3):
                r0 = PAD - d + ky * d
                c0 = PAD - d + kx * d
                rows.append(xp[:, :, r0:r0 + H, c0:c0 + W].reshape(n, C_IN, HW))
    # Image-level branch: global average pool, lane-splat (bilinear upsample
    # from a 1x1 source is exactly a constant broadcast).
    pooled = jnp.mean(x_nchw, axis=(2, 3))                   # (n, C)
    rows.append(jnp.broadcast_to(pooled[:, :, None], (n, C_IN, HW)))
    stack = jnp.concatenate(rows, axis=1)                    # (n, 116, 256)
    stack = jnp.pad(stack, ((0, 0), (0, K_PAD - K_IMG), (0, 0)))   # K -> 128
    taps = jnp.transpose(stack, (1, 0, 2)).reshape(K_PAD, n * HW)  # batch on lanes
    return taps.astype(jnp.bfloat16)


@jax.jit
def aspp_forward(x_nchw, wbig, b_total):
    n = x_nchw.shape[0]
    taps = build_taps(x_nchw)
    out = aspp_pallas(taps, wbig, b_total)                   # (D, n*HW)
    return out.reshape(DEPTH, n, H, W).transpose(1, 0, 2, 3)  # (n, D, H, W)


# ----------------------------------------------------------------------------
# Offline (exact) fusion of the final 1x1 projection into every branch.
# Valid because this ASPP variant is purely linear (no BN/ReLU/dropout).
# ----------------------------------------------------------------------------
def to_kernel_params(torch_params):
    (Wc, bc, W1, b1, W6, b6, W12, b12, W18, b18, Wo, bo) = torch_params
    dot = lambda a, b: jnp.dot(a, b, precision=PREC)
    Wo2 = Wo[:, :, 0, 0]                                     # (D, 5D)
    Wo_img, Wo_1, Wo_6, Wo_12, Wo_18 = (
        Wo2[:, i * DEPTH:(i + 1) * DEPTH] for i in range(5))

    blocks = [dot(Wo_1, W1[:, :, 0, 0])]                     # 1x1 center block
    for Wo_d, Wd in ((Wo_6, W6), (Wo_12, W12), (Wo_18, W18)):
        for ky in range(3):
            for kx in range(3):
                blocks.append(dot(Wo_d, Wd[:, :, ky, kx]))
    blocks.append(dot(Wo_img, Wc[:, :, 0, 0]))               # image-level cols
    blocks.append(jnp.zeros((DEPTH, K_PAD - K_IMG), jnp.float32))   # pad K->128
    wbig = jnp.concatenate(blocks, axis=1)                   # (D, 128)

    b_total = (bo + dot(Wo_img, bc) + dot(Wo_1, b1) + dot(Wo_6, b6)
               + dot(Wo_12, b12) + dot(Wo_18, b18)).reshape(DEPTH, 1)
    return wbig.astype(jnp.bfloat16), b_total


# ----------------------------------------------------------------------------
# Pure-JAX reference (mirrors the PyTorch forward in NCHW) for verification.
# ----------------------------------------------------------------------------
def _conv_ref(x, w, b, dil=1, pad=0):
    y = lax.conv_general_dilated(
        x, w, window_strides=(1, 1),
        padding=((pad, pad), (pad, pad)),
        rhs_dilation=(dil, dil),
        dimension_numbers=('NCHW', 'OIHW', 'NCHW'),
        precision=PREC)
    return y + b.reshape(1, -1, 1, 1)


def aspp_ref(x_nchw, torch_params):
    (Wc, bc, W1, b1, W6, b6, W12, b12, W18, b18, Wo, bo) = torch_params
    pooled = jnp.mean(x_nchw, axis=(2, 3), keepdims=True)
    img = _conv_ref(pooled, Wc, bc)
    img = jnp.broadcast_to(img, (x_nchw.shape[0], DEPTH, H, W))
    a1 = _conv_ref(x_nchw, W1, b1)
    a6 = _conv_ref(x_nchw, W6, b6, dil=6, pad=6)
    a12 = _conv_ref(x_nchw, W12, b12, dil=12, pad=12)
    a18 = _conv_ref(x_nchw, W18, b18, dil=18, pad=18)
    cat = jnp.concatenate([img, a1, a6, a12, a18], axis=1)
    return _conv_ref(cat, Wo, bo)


def make_params(key):
    """Deterministic synthetic parameters in PyTorch (OIHW) layout."""
    ks = jax.random.split(key, 12)
    def w(k, shape):
        return jax.random.normal(k, shape, jnp.float32) * 0.1
    Wc = w(ks[0], (DEPTH, C_IN, 1, 1));  bc = w(ks[1], (DEPTH,))
    W1 = w(ks[2], (DEPTH, C_IN, 1, 1));  b1 = w(ks[3], (DEPTH,))
    W6 = w(ks[4], (DEPTH, C_IN, 3, 3));  b6 = w(ks[5], (DEPTH,))
    W12 = w(ks[6], (DEPTH, C_IN, 3, 3)); b12 = w(ks[7], (DEPTH,))
    W18 = w(ks[8], (DEPTH, C_IN, 3, 3)); b18 = w(ks[9], (DEPTH,))
    Wo = w(ks[10], (DEPTH, 5 * DEPTH, 1, 1)); bo = w(ks[11], (DEPTH,))
    return (Wc, bc, W1, b1, W6, b6, W12, b12, W18, b18, Wo, bo)


if __name__ == "__main__":
    key = jax.random.PRNGKey(0)
    kx, kp = jax.random.split(key)
    x_nchw = jax.random.normal(kx, (N, C_IN, H, W), jnp.float32)

    torch_params = make_params(kp)
    wbig, b_total = to_kernel_params(torch_params)

    out_nchw = jax.block_until_ready(aspp_forward(x_nchw, wbig, b_total))
    ref_nchw = aspp_ref(x_nchw, torch_params)

    assert out_nchw.shape == (N, DEPTH, H, W)
    err = float(jnp.max(jnp.abs(out_nchw - ref_nchw)))
    # bf16 MXU operands + f32 accumulation: expected max abs error ~1e-2 on
    # outputs of magnitude ~0.3, hence the relaxed (but meaningful) tolerance.
    assert jnp.allclose(out_nchw, ref_nchw, atol=2e-2, rtol=2e-2), err
    print("KERNEL_OK")
</pallas_src>

<mosaic_0001>
module attributes {stable_mosaic.version = 11 : i64} {
  func.func @_aspp_kernel(%arg0: i32, %arg1: memref<128x512xbf16, #tpu.memory_space<vmem>>, %arg2: memref<8x128xbf16, #tpu.memory_space<vmem>>, %arg3: memref<8x1xf32, #tpu.memory_space<vmem>>, %arg4: memref<8x512xf32, #tpu.memory_space<vmem>>) attributes {dimension_semantics = [#tpu.dimension_semantics<arbitrary>], iteration_bounds = array<i64: 1>, scalar_prefetch = 0 : i64, scratch_operands = 0 : i64, tpu.core_type = #tpu.core_type<tc>, window_params = [{pipeline_mode = #tpu.pipeline_mode<synchronous>, transform_indices = @transform_0, window_bounds = array<i64: 128, 512>}, {pipeline_mode = #tpu.pipeline_mode<synchronous>, transform_indices = @transform_1, window_bounds = array<i64: 8, 128>}, {pipeline_mode = #tpu.pipeline_mode<synchronous>, transform_indices = @transform_2, window_bounds = array<i64: 8, 1>}, {pipeline_mode = #tpu.pipeline_mode<synchronous>, transform_indices = @transform_3, window_bounds = array<i64: 8, 512>}]} {
    %c0 = arith.constant 0 : index
    %c0_0 = arith.constant 0 : index
    %0 = vector.load %arg2[%c0, %c0_0] : memref<8x128xbf16, #tpu.memory_space<vmem>>, vector<8x128xbf16>
    %c0_1 = arith.constant 0 : index
    %c0_2 = arith.constant 0 : index
    %1 = vector.load %arg1[%c0_1, %c0_2] : memref<128x512xbf16, #tpu.memory_space<vmem>>, vector<128x512xbf16>
    %cst = arith.constant dense<0.000000e+00> : vector<8x512xf32>
    %2 = tpu.matmul %0, %1, %cst {dimension_numbers = #tpu.dot_dimension_numbers<[1], [0], [0], [1], [0, 0, 1, 1], [], []>} : vector<8x128xbf16>, vector<128x512xbf16>, vector<8x512xf32> -> vector<8x512xf32>
    %c0_3 = arith.constant 0 : index
    %c0_4 = arith.constant 0 : index
    %3 = vector.load %arg3[%c0_3, %c0_4] : memref<8x1xf32, #tpu.memory_space<vmem>>, vector<8x1xf32>
    %4 = vector.broadcast %3 : vector<8x1xf32> to vector<8x512xf32>
    %5 = arith.addf %2, %4 : vector<8x512xf32>
    %c0_5 = arith.constant 0 : index
    %c0_6 = arith.constant 0 : index
    %6 = vector.load %arg4[%c0_5, %c0_6] : memref<8x512xf32, #tpu.memory_space<vmem>>, vector<8x512xf32>
    tpu.vector_store %arg4[%c0_5, %c0_6], %5 {strides = array<i32>} : memref<8x512xf32, #tpu.memory_space<vmem>>, vector<8x512xf32>,
    return
  }
  func.func @transform_0(%arg0: i32) -> (i32, i32) {
    %c0_i32 = arith.constant 0 : i32
    %c0_i32_0 = arith.constant 0 : i32
    %c0_i32_1 = arith.constant 0 : i32
    return %c0_i32, %c0_i32_0 : i32, i32
  }
  func.func @transform_1(%arg0: i32) -> (i32, i32) {
    %c0_i32 = arith.constant 0 : i32
    %c0_i32_0 = arith.constant 0 : i32
    %c0_i32_1 = arith.constant 0 : i32
    return %c0_i32, %c0_i32_0 : i32, i32
  }
  func.func @transform_2(%arg0: i32) -> (i32, i32) {
    %c0_i32 = arith.constant 0 : i32
    %c0_i32_0 = arith.constant 0 : i32
    %c0_i32_1 = arith.constant 0 : i32
    return %c0_i32, %c0_i32_0 : i32, i32
  }
  func.func @transform_3(%arg0: i32) -> (i32, i32) {
    %c0_i32 = arith.constant 0 : i32
    %c0_i32_0 = arith.constant 0 : i32
    %c0_i32_1 = arith.constant 0 : i32
    return %c0_i32, %c0_i32_0 : i32, i32
  }
}

</mosaic_0001>

<llo_original>
// kernel: aspp_forward.1
$region0: #{aspp_forward.1}
  #allocation0 [shape = 'u32[]', space=smem, size = 0x4, offset = 0x4, fixed_abs, tag = 'smem constant byte address 0x4 - core index']
  #allocation1 [shape = 'u32[144,128]{1,0:T(1,128)}', space=vmem, size = 0x12000, scoped, tag = 'internal scratch']
  %s0 = inlined_call_operand.vmem [shape: bf16[128,512], index: 0, kind: input, shape index: {}]
  %s1 = inlined_call_operand.vmem [shape: bf16[8,128], index: 1, kind: input, shape index: {}]
  %s2 = inlined_call_operand.vmem [shape: f32[8,1], index: 2, kind: input, shape index: {}]
  %s3 = inlined_call_operand.vmem [shape: f32[8,512], index: 3, kind: output, shape index: {}]
  %s4 = sld [smem:[#allocation0]]
  $region22: #{aspp_forward.1} parent=0
    _
  %s6 = ssub.s32 1, %s4
  %s7 = scalar_select 0, %s6, %s4
  // Predicated region
  $region2: #{aspp_forward.1} parent=0 // pred_check
    _
  $region3: #{aspp_forward.1} parent=0 // pred_check_branch
    %9 = sbr.rel (0) target = $region5
  $region4: #{aspp_forward.1} parent=0 // pred_region
    _
  $region5: #{aspp_forward.1} parent=0 // pred_fallthru
    _
  // Predicated region
  $region6: #{aspp_forward.1} parent=0 // pred_check
    _
  $region7: #{aspp_forward.1} parent=0 // pred_check_branch
    %11 = sbr.rel (0) target = $region9
  $region8: #{aspp_forward.1} parent=0 // pred_region
    _
  $region9: #{aspp_forward.1} parent=0 // pred_fallthru
    _
  // Predicated region
  $region10: #{aspp_forward.1} parent=0 // pred_check
    _
  $region11: #{aspp_forward.1} parent=0 // pred_check_branch
    %13 = sbr.rel (0) target = $region13
  $region12: #{aspp_forward.1} parent=0 // pred_region
    _
  $region13: #{aspp_forward.1} parent=0 // pred_fallthru
    _
  %v15 = vld [vmem:[%s1] sm:$0xf]
  %v16 = vld [vmem:[%s0] sm:$0xff]
  %v17 = vld [vmem:[%s0 + $0x8] sm:$0xff]
  %v18 = vld [vmem:[%s0 + $0x10] sm:$0xff]
  %v19 = vld [vmem:[%s0 + $0x18] sm:$0xff]
  %v20 = vld [vmem:[%s0 + $0x20] sm:$0xff]
  %v21 = vld [vmem:[%s0 + $0x28] sm:$0xff]
  %v22 = vld [vmem:[%s0 + $0x30] sm:$0xff]
  %v23 = vld [vmem:[%s0 + $0x38] sm:$0xff]
  %v24 = vld [vmem:[%s0 + $0x40] sm:$0xff]
  %v25 = vld [vmem:[%s0 + $0x48] sm:$0xff]
  %v26 = vld [vmem:[%s0 + $0x50] sm:$0xff]
  %v27 = vld [vmem:[%s0 + $0x58] sm:$0xff]
  %v28 = vld [vmem:[%s0 + $0x60] sm:$0xff]
  %v29 = vld [vmem:[%s0 + $0x68] sm:$0xff]
  %v30 = vld [vmem:[%s0 + $0x70] sm:$0xff]
  %v31 = vld [vmem:[%s0 + $0x78] sm:$0xff]
  %v32 = vld [vmem:[%s0 + $0x80] sm:$0xff]
  %v33 = vld [vmem:[%s0 + $0x88] sm:$0xff]
  %v34 = vld [vmem:[%s0 + $0x90] sm:$0xff]
  %v35 = vld [vmem:[%s0 + $0x98] sm:$0xff]
  %v36 = vld [vmem:[%s0 + $0xa0] sm:$0xff]
  %v37 = vld [vmem:[%s0 + $0xa8] sm:$0xff]
  %v38 = vld [vmem:[%s0 + $0xb0] sm:$0xff]
  %v39 = vld [vmem:[%s0 + $0xb8] sm:$0xff]
  %v40 = vld [vmem:[%s0 + $0xc0] sm:$0xff]
  %v41 = vld [vmem:[%s0 + $0xc8] sm:$0xff]
  %v42 = vld [vmem:[%s0 + $0xd0] sm:$0xff]
  %v43 = vld [vmem:[%s0 + $0xd8] sm:$0xff]
  %v44 = vld [vmem:[%s0 + $0xe0] sm:$0xff]
  %v45 = vld [vmem:[%s0 + $0xe8] sm:$0xff]
  %v46 = vld [vmem:[%s0 + $0xf0] sm:$0xff]
  %v47 = vld [vmem:[%s0 + $0xf8] sm:$0xff]
  %v48 = vld [vmem:[%s2] sm:$0xff]
  %50 = vset.pattern.permute.xlu0 0
  %51 = vperm.xlu0 %50, %v48
  %v52 = vpop.permute.xlu0 %51
  %v86 = vunpack.c.l.b16 %v16
  %v87 = vunpack.c.h.b16 %v16
  %v88 = vunpack.c.l.b16 %v17
  %v89 = vunpack.c.h.b16 %v17
  %v90 = vunpack.c.l.b16 %v18
  %v91 = vunpack.c.h.b16 %v18
  %v92 = vunpack.c.l.b16 %v19
  %v93 = vunpack.c.h.b16 %v19
  %v94 = vunpack.c.l.b16 %v20
  %v95 = vunpack.c.h.b16 %v20
  %v96 = vunpack.c.l.b16 %v21
  %v97 = vunpack.c.h.b16 %v21
  %v98 = vunpack.c.l.b16 %v22
  %v99 = vunpack.c.h.b16 %v22
  %v100 = vunpack.c.l.b16 %v23
  %v101 = vunpack.c.h.b16 %v23
  %v102 = vunpack.c.l.b16 %v24
  %v103 = vunpack.c.h.b16 %v24
  %v104 = vunpack.c.l.b16 %v25
  %v105 = vunpack.c.h.b16 %v25
  %v106 = vunpack.c.l.b16 %v26
  %v107 = vunpack.c.h.b16 %v26
  %v108 = vunpack.c.l.b16 %v27
  %v109 = vunpack.c.h.b16 %v27
  %v110 = vunpack.c.l.b16 %v28
  %v111 = vunpack.c.h.b16 %v28
  %v112 = vunpack.c.l.b16 %v29
  %v113 = vunpack.c.h.b16 %v29
  %v114 = vunpack.c.l.b16 %v30
  %v115 = vunpack.c.h.b16 %v30
  %v116 = vunpack.c.l.b16 %v31
  %v117 = vunpack.c.h.b16 %v31
  %v118 = vunpack.c.l.b16 %v32
  %v119 = vunpack.c.h.b16 %v32
  %v120 = vunpack.c.l.b16 %v33
  %v121 = vunpack.c.h.b16 %v33
  %v122 = vunpack.c.l.b16 %v34
  %v123 = vunpack.c.h.b16 %v34
  %v124 = vunpack.c.l.b16 %v35
  %v125 = vunpack.c.h.b16 %v35
  %v126 = vunpack.c.l.b16 %v36
  %v127 = vunpack.c.h.b16 %v36
  %v128 = vunpack.c.l.b16 %v37
  %v129 = vunpack.c.h.b16 %v37
  %v130 = vunpack.c.l.b16 %v38
  %v131 = vunpack.c.h.b16 %v38
  %v132 = vunpack.c.l.b16 %v39
  %v133 = vunpack.c.h.b16 %v39
  %v134 = vunpack.c.l.b16 %v40
  %v135 = vunpack.c.h.b16 %v40
  %v136 = vunpack.c.l.b16 %v41
  %v137 = vunpack.c.h.b16 %v41
  %v138 = vunpack.c.l.b16 %v42
  %v139 = vunpack.c.h.b16 %v42
  %v140 = vunpack.c.l.b16 %v43
  %v141 = vunpack.c.h.b16 %v43
  %v142 = vunpack.c.l.b16 %v44
  %v143 = vunpack.c.h.b16 %v44
  %v144 = vunpack.c.l.b16 %v45
  %v145 = vunpack.c.h.b16 %v45
  %v146 = vunpack.c.l.b16 %v46
  %v147 = vunpack.c.h.b16 %v46
  %v148 = vunpack.c.l.b16 %v47
  %v149 = vunpack.c.h.b16 %v47
  %v150 = vpack.c.b16 %v90, %v86
  %v151 = vpack.c.b16 %v91, %v87
  %v152 = vpack.c.b16 %v92, %v88
  %v153 = vpack.c.b16 %v93, %v89
  %v154 = vpack.c.b16 %v98, %v94
  %v155 = vpack.c.b16 %v99, %v95
  %v156 = vpack.c.b16 %v100, %v96
  %v157 = vpack.c.b16 %v101, %v97
  %v158 = vpack.c.b16 %v106, %v102
  %v159 = vpack.c.b16 %v107, %v103
  %v160 = vpack.c.b16 %v108, %v104
  %v161 = vpack.c.b16 %v109, %v105
  %v162 = vpack.c.b16 %v114, %v110
  %v163 = vpack.c.b16 %v115, %v111
  %v164 = vpack.c.b16 %v116, %v112
  %v165 = vpack.c.b16 %v117, %v113
  %v166 = vpack.c.b16 %v122, %v118
  %v167 = vpack.c.b16 %v123, %v119
  %v168 = vpack.c.b16 %v124, %v120
  %v169 = vpack.c.b16 %v125, %v121
  %v170 = vpack.c.b16 %v130, %v126
  %v171 = vpack.c.b16 %v131, %v127
  %v172 = vpack.c.b16 %v132, %v128
  %v173 = vpack.c.b16 %v133, %v129
  %v174 = vpack.c.b16 %v138, %v134
  %v175 = vpack.c.b16 %v139, %v135
  %v176 = vpack.c.b16 %v140, %v136
  %v177 = vpack.c.b16 %v141, %v137
  %v178 = vpack.c.b16 %v146, %v142
  %v179 = vpack.c.b16 %v147, %v143
  %v180 = vpack.c.b16 %v148, %v144
  %v181 = vpack.c.b16 %v149, %v145
  %214 = vmatprep.subr.bf16.mxu0 %v179
  %215 = vmatpush1.bf16.msra.mxu0 %v178
  %216 = vmatprep.subr.bf16.mxu0 %v175
  %217 = vmatpush1.bf16.msra.mxu0 %v174
  %218 = vmatprep.subr.bf16.mxu0 %v171
  %219 = vmatpush1.bf16.msra.mxu0 %v170
  %220 = vmatprep.subr.bf16.mxu0 %v167
  %221 = vmatpush1.bf16.msra.mxu0 %v166
  %222 = vmatprep.subr.bf16.mxu0 %v163
  %223 = vmatpush1.bf16.msra.mxu0 %v162
  %224 = vmatprep.subr.bf16.mxu0 %v159
  %225 = vmatpush1.bf16.msra.mxu0 %v158
  %226 = vmatprep.subr.bf16.mxu0 %v155
  %227 = vmatpush1.bf16.msra.mxu0 %v154
  %228 = vmatprep.subr.bf16.mxu0 %v151
  %229 = vmatpush1.bf16.msra.mxu0 %v150
  %230 = vmatprep.subr.bf16.mxu0 0
  %231 = vmatpush2.bf16.msra.mxu0 0
  %232 = vmatprep.subr.bf16.mxu0 0
  %233 = vmatpush2.bf16.msra.mxu0 0
  %234 = vmatprep.subr.bf16.mxu0 0
  %235 = vmatpush2.bf16.msra.mxu0 0
  %236 = vmatprep.subr.bf16.mxu0 0
  %237 = vmatpush2.bf16.msra.mxu0 0
  %238 = vmatprep.subr.bf16.mxu0 0
  %239 = vmatpush2.bf16.msra.mxu0 0
  %240 = vmatprep.subr.bf16.mxu0 0
  %241 = vmatpush2.bf16.msra.mxu0 0
  %242 = vmatprep.subr.bf16.mxu0 0
  %243 = vmatpush2.bf16.msra.mxu0 0
  %244 = vmatprep.subr.bf16.mxu0 0
  %245 = vmatpush2.bf16.msra.mxu0 0
  %246 = vmatprep.mubr.bf16.mxu0 0
  %247 = vmatmul.mubr.bf16.gmra.mxu0 %v15
  %v248 = vpop.f32.mrf.mxu0
  %v249 = vadd.f32 %v52, %v248
  %v250 = vpop.f32.mrf.mxu0
  %v251 = vadd.f32 %v52, %v250
  %v252 = vpop.f32.mrf.mxu0
  %v253 = vpop.f32.mrf.mxu0
  %254 = vdwg.mxu0
  %255 = vmatprep.subr.bf16.mxu0 %v181
  %256 = vmatpush1.bf16.msra.mxu0 %v180
  %257 = vmatprep.subr.bf16.mxu0 %v177
  %258 = vmatpush1.bf16.msra.mxu0 %v176
  %259 = vmatprep.subr.bf16.mxu0 %v173
  %260 = vmatpush1.bf16.msra.mxu0 %v172
  %261 = vmatprep.subr.bf16.mxu0 %v169
  %262 = vmatpush1.bf16.msra.mxu0 %v168
  %263 = vmatprep.subr.bf16.mxu0 %v165
  %264 = vmatpush1.bf16.msra.mxu0 %v164
  %265 = vmatprep.subr.bf16.mxu0 %v161
  %266 = vmatpush1.bf16.msra.mxu0 %v160
  %267 = vmatprep.subr.bf16.mxu0 %v157
  %268 = vmatpush1.bf16.msra.mxu0 %v156
  %269 = vmatprep.subr.bf16.mxu0 %v153
  %270 = vmatpush1.bf16.msra.mxu0 %v152
  %271 = vmatprep.subr.bf16.mxu0 0
  %272 = vmatpush2.bf16.msra.mxu0 0
  %273 = vmatprep.subr.bf16.mxu0 0
  %274 = vmatpush2.bf16.msra.mxu0 0
  %275 = vmatprep.subr.bf16.mxu0 0
  %276 = vmatpush2.bf16.msra.mxu0 0
  %277 = vmatprep.subr.bf16.mxu0 0
  %278 = vmatpush2.bf16.msra.mxu0 0
  %279 = vmatprep.subr.bf16.mxu0 0
  %280 = vmatpush2.bf16.msra.mxu0 0
  %281 = vmatprep.subr.bf16.mxu0 0
  %282 = vmatpush2.bf16.msra.mxu0 0
  %283 = vmatprep.subr.bf16.mxu0 0
  %284 = vmatpush2.bf16.msra.mxu0 0
  %285 = vmatprep.subr.bf16.mxu0 0
  %286 = vmatpush2.bf16.msra.mxu0 0
  %287 = vmatprep.mubr.bf16.mxu0 0
  %288 = vmatmul.mubr.bf16.gmra.mxu0 %v15
  %v289 = vpop.f32.mrf.mxu0
  %v290 = vadd.f32 %v52, %v289
  %v291 = vpop.f32.mrf.mxu0
  %v292 = vadd.f32 %v52, %v291
  %v293 = vpop.f32.mrf.mxu0
  %v294 = vpop.f32.mrf.mxu0
  %295 = vdwg.mxu0
  %296 = vst [vmem:[%s3] sm:$0xff] %v249
  %297 = vst [vmem:[%s3 + $0x8] sm:$0xff] %v251
  %298 = vst [vmem:[%s3 + $0x10] sm:$0xff] %v290
  %299 = vst [vmem:[%s3 + $0x18] sm:$0xff] %v292
  // Predicated region
  $region14: #{aspp_forward.1} parent=0 // pred_check
    _
  $region15: #{aspp_forward.1} parent=0 // pred_check_branch
    %301 = sbr.rel (0) target = $region17
  $region16: #{aspp_forward.1} parent=0 // pred_region
    _
  $region17: #{aspp_forward.1} parent=0 // pred_fallthru
    _
  // Predicated region
  $region18: #{aspp_forward.1} parent=0 // pred_check
    _
  $region19: #{aspp_forward.1} parent=0 // pred_check_branch
    %303 = sbr.rel (0) target = $region21
  $region20: #{aspp_forward.1} parent=0 // pred_region
    _
  $region21: #{aspp_forward.1} parent=0 // pred_fallthru
    _

</llo_original>
